<compile_context>
chip_gen: v7x
topology: tpu7x:2x2x1
jax: 0.10.0
libtpu: 0.0.40
codegen_flags: <defaults>
</compile_context>

<pallas_src>
import functools
import math
from typing import NamedTuple

import jax
import jax.numpy as jnp
from jax.experimental import pallas as pl
from jax.experimental.pallas import tpu as pltpu


def _round_up(x, m):
    return (x + m - 1) // m * m


class EncoderParams(NamedTuple):
    w1: jax.Array      # [P*x_dim, P*hidden]   block-diagonal (P copies of W1)
    b1: jax.Array      # [1, P*hidden]
    w2: jax.Array      # [P*hidden, P*2*z_dim] block-diagonal (P copies of W2)
    b2: jax.Array      # [1, P*2*z_dim]
    z_dim: int
    x_dim: int
    hidden: int
    out_cols: int      # 2 * z_dim
    pack: int          # P: logical rows packed per 128-lane output row


def pack_encoder_params(w1, b1, w2, b2, z_dim, *,
                        max_pack=32, max_weight_bytes=8 << 20):
    """One-time weight prep (hoisted out of the forward path).

    Picks the smallest packing factor P such that P * (2*z_dim) is a multiple
    of 128 lanes (lane-dense output, zero padding waste) and builds
    block-diagonal copies of the weights.  Falls back to P=1 (narrow output
    block) if the packed weights would be too large.
    """
    x_dim, hidden = w1.shape
    out_cols = w2.shape[1]                       # 2 * z_dim

    p = 128 // math.gcd(128, out_cols)
    packed_weight_bytes = 4 * (p * x_dim * p * hidden + p * hidden * p * out_cols)
    if p > max_pack or packed_weight_bytes > max_weight_bytes:
        p = 1

    b1 = b1.reshape(1, -1)
    b2 = b2.reshape(1, -1)
    if p > 1:
        eye = jnp.eye(p, dtype=w1.dtype)
        w1p = jnp.kron(eye, w1)                  # [P*x_dim, P*hidden]
        w2p = jnp.kron(eye, w2)                  # [P*hidden, P*out_cols]
        b1p = jnp.tile(b1, (1, p))
        b2p = jnp.tile(b2, (1, p))
    else:
        w1p, b1p, w2p, b2p = w1, b1, w2, b2

    return EncoderParams(w1=w1p, b1=b1p, w2=w2p, b2=b2p, z_dim=z_dim,
                         x_dim=x_dim, hidden=hidden, out_cols=out_cols, pack=p)


def _resident_spec(shape):
    """Spec for an operand whose index_map is constant (stays resident in VMEM).

    Single-buffered: it is DMA'd once, so a second pipeline buffer is pure
    VMEM waste.  Falls back to the default (double-buffered) spec on JAX
    versions without the pipeline_mode kwarg.
    """
    try:
        return pl.BlockSpec(shape, lambda i: (0, 0), pipeline_mode=pl.Buffered(1))
    except TypeError:
        return pl.BlockSpec(shape, lambda i: (0, 0))


def _encoder_kernel(x_ref, w1_ref, b1_ref, w2_ref, b2_ref, out_ref, *,
                    z_dim, out_cols):
    # Hidden layer: Linear -> ReLU (MXU matmul with f32 accumulation, ReLU on VPU).
    h = jnp.dot(x_ref[...], w1_ref[...], preferred_element_type=jnp.float32)
    h = jnp.maximum(h + b1_ref[...], 0.0)                      # [TN, P*H] + [1, P*H]

    # Output layer: Linear -> [TN, P*out_cols] (lane-dense, no padded lanes).
    out = jnp.dot(h, w2_ref[...], preferred_element_type=jnp.float32)
    out = out + b2_ref[...]                                    # [TN, P*OC] + [1, P*OC]

    # Per packed block of out_cols lanes: first z_dim lanes = means (identity),
    # remaining lanes = softplus(vars).  Stable softplus matches F.softplus:
    # max(x,0) + log1p(exp(-|x|))  (exp/log1p go to the EUP slot).
    sp = jnp.maximum(out, 0.0) + jnp.log1p(jnp.exp(-jnp.abs(out)))
    lane = jax.lax.broadcasted_iota(jnp.int32, out.shape, dimension=1)
    is_mean = (lane % out_cols) < z_dim
    out_ref[...] = jnp.where(is_mean, out, sp).astype(out_ref.dtype)


def encoder_forward(x, params: EncoderParams, *,
                    max_rows_per_step=8192, vmem_budget_bytes=10 << 20):
    """Encoder forward: returns (means, vars) like the PyTorch module."""
    n, x_dim = x.shape
    assert x_dim == params.x_dim
    p = params.pack
    out_cols = params.out_cols
    kp = params.w1.shape[0]                      # P * x_dim
    hp = params.w1.shape[1]                      # P * hidden
    out_w = params.w2.shape[1]                   # P * out_cols (multiple of 128 when P>1)

    # --- Choose the packed-row tile (as large as the VMEM budget allows). ---
    n_packed = -(-n // p)
    # Bytes per packed row that scale with the tile: double-buffered x/out DMA
    # buffers plus the in-kernel h/out f32 temporaries.
    per_row_bytes = 4 * (2 * (kp + out_w) + hp + out_w)
    tile = vmem_budget_bytes // per_row_bytes
    tile = min(tile, max(1, max_rows_per_step // p))
    tile = max(8, (tile // 8) * 8)               # sublane multiple
    tile = min(tile, _round_up(n_packed, 8))     # don't exceed (padded) problem size
    n_packed_pad = _round_up(n_packed, tile)
    grid = (n_packed_pad // tile,)

    # --- Pack P logical rows per packed row (contiguous reshape, free). ---
    n_rows_pad = n_packed_pad * p
    if n_rows_pad != n:
        x = jnp.pad(x, ((0, n_rows_pad - n), (0, 0)))
    x_packed = x.reshape(n_packed_pad, kp)

    cost = pl.CostEstimate(
        flops=2 * n_packed_pad * (kp * hp + hp * out_w),
        transcendentals=2 * n_packed_pad * out_w,
        bytes_accessed=4 * (n_packed_pad * (kp + out_w)
                            + kp * hp + hp + hp * out_w + out_w),
    )

    kernel = functools.partial(_encoder_kernel, z_dim=params.z_dim,
                               out_cols=out_cols)
    out = pl.pallas_call(
        kernel,
        out_shape=jax.ShapeDtypeStruct((n_packed_pad, out_w), jnp.float32),
        grid=grid,
        in_specs=[
            pl.BlockSpec((tile, kp), lambda i: (i, 0)),  # x tile (pipelined)
            _resident_spec((kp, hp)),                    # W1 block-diag (resident)
            _resident_spec((1, hp)),                     # b1 tiled      (resident)
            _resident_spec((hp, out_w)),                 # W2 block-diag (resident)
            _resident_spec((1, out_w)),                  # b2 tiled      (resident)
        ],
        out_specs=pl.BlockSpec((tile, out_w), lambda i: (i, 0)),
        compiler_params=pltpu.CompilerParams(
            dimension_semantics=("parallel",),           # megacore sharding on v7x
            vmem_limit_bytes=32 * 1024 * 1024,
        ),
        cost_estimate=cost,
    )(x_packed, params.w1, params.b1, params.w2, params.b2)

    # Unpack: [n_packed_pad, P*out_cols] -> [N, out_cols] (contiguous, free).
    out = out[:n_packed].reshape(n_packed * p, out_cols)[:n]
    means = out[:, :params.z_dim]
    vars_ = out[:, params.z_dim:]
    return means, vars_


def init_encoder_params(key, x_dim, z_dim, hidden_dim):
    """nn.Linear default init U[-1/sqrt(fan_in), 1/sqrt(fan_in)], weights stored [in, out]."""
    k1, k2, k3, k4 = jax.random.split(key, 4)
    bound1 = 1.0 / jnp.sqrt(x_dim)
    bound2 = 1.0 / jnp.sqrt(hidden_dim)
    w1 = jax.random.uniform(k1, (x_dim, hidden_dim), jnp.float32, -bound1, bound1)
    b1 = jax.random.uniform(k2, (1, hidden_dim), jnp.float32, -bound1, bound1)
    w2 = jax.random.uniform(k3, (hidden_dim, 2 * z_dim), jnp.float32, -bound2, bound2)
    b2 = jax.random.uniform(k4, (1, 2 * z_dim), jnp.float32, -bound2, bound2)
    return w1, b1, w2, b2


def _reference(x, w1, b1, w2, b2, z_dim):
    h = jnp.maximum(x @ w1 + b1, 0.0)
    out = h @ w2 + b2
    return out[:, :z_dim], jax.nn.softplus(out[:, z_dim:])


if __name__ == "__main__":
    # Small shapes consistent with the module's constructor.
    x_dim, z_dim, hidden_dim = 64, 8, 32

    key = jax.random.PRNGKey(0)
    k_x, k_p, k_x2 = jax.random.split(key, 3)
    w1, b1, w2, b2 = init_encoder_params(k_p, x_dim, z_dim, hidden_dim)

    # One-time weight prep (block-diagonal packing), hoisted out of the forward path.
    params = pack_encoder_params(w1, b1, w2, b2, z_dim)

    ok = True

    # Case 1: tiny batch (single packed tile, heavy row padding).
    x = jax.random.normal(k_x, (16, x_dim), jnp.float32)
    means, vars_ = encoder_forward(x, params)
    means = jax.block_until_ready(means)
    vars_ = jax.block_until_ready(vars_)
    m_ref, v_ref = _reference(x, w1, b1, w2, b2, z_dim)
    ok &= means.shape == (16, z_dim) and vars_.shape == (16, z_dim)
    ok &= bool(jnp.allclose(means, m_ref, atol=1e-5, rtol=1e-5))
    ok &= bool(jnp.allclose(vars_, v_ref, atol=1e-5, rtol=1e-5))

    # Case 2: batch not a multiple of the packing factor (385 rows, P=8).
    x2 = jax.random.normal(k_x2, (385, x_dim), jnp.float32)
    means2, vars2 = encoder_forward(x2, params)
    means2 = jax.block_until_ready(means2)
    vars2 = jax.block_until_ready(vars2)
    m_ref2, v_ref2 = _reference(x2, w1, b1, w2, b2, z_dim)
    ok &= means2.shape == (385, z_dim) and vars2.shape == (385, z_dim)
    ok &= bool(jnp.allclose(means2, m_ref2, atol=1e-5, rtol=1e-5))
    ok &= bool(jnp.allclose(vars2, v_ref2, atol=1e-5, rtol=1e-5))

    # Case 3: force a multi-step grid (small tile) to exercise the pipeline path.
    means3, vars3 = encoder_forward(x2, params, max_rows_per_step=128)
    means3 = jax.block_until_ready(means3)
    vars3 = jax.block_until_ready(vars3)
    ok &= bool(jnp.allclose(means3, m_ref2, atol=1e-5, rtol=1e-5))
    ok &= bool(jnp.allclose(vars3, v_ref2, atol=1e-5, rtol=1e-5))

    assert ok
    print("KERNEL_OK")
</pallas_src>

<mosaic_0001>
module attributes {stable_mosaic.version = 11 : i64} {
  func.func @_encoder_kernel(%arg0: i32, %arg1: memref<8x512xf32, #tpu.memory_space<vmem>>, %arg2: memref<512x256xf32, #tpu.memory_space<vmem>>, %arg3: memref<1x256xf32, #tpu.memory_space<vmem>>, %arg4: memref<256x128xf32, #tpu.memory_space<vmem>>, %arg5: memref<1x128xf32, #tpu.memory_space<vmem>>, %arg6: memref<8x128xf32, #tpu.memory_space<vmem>>) attributes {dimension_semantics = [#tpu.dimension_semantics<parallel>], iteration_bounds = array<i64: 1>, scalar_prefetch = 0 : i64, scratch_operands = 0 : i64, tpu.core_type = #tpu.core_type<tc>, window_params = [{transform_indices = @transform_0, window_bounds = array<i64: 8, 512>}, {pipeline_mode = #tpu.pipeline_mode<synchronous>, transform_indices = @transform_1, window_bounds = array<i64: 512, 256>}, {pipeline_mode = #tpu.pipeline_mode<synchronous>, transform_indices = @transform_2, window_bounds = array<i64: 1, 256>}, {pipeline_mode = #tpu.pipeline_mode<synchronous>, transform_indices = @transform_3, window_bounds = array<i64: 256, 128>}, {pipeline_mode = #tpu.pipeline_mode<synchronous>, transform_indices = @transform_4, window_bounds = array<i64: 1, 128>}, {transform_indices = @transform_5, window_bounds = array<i64: 8, 128>}]} {
    %c0 = arith.constant 0 : index
    %c0_0 = arith.constant 0 : index
    %0 = vector.load %arg1[%c0, %c0_0] : memref<8x512xf32, #tpu.memory_space<vmem>>, vector<8x512xf32>
    %c0_1 = arith.constant 0 : index
    %c0_2 = arith.constant 0 : index
    %1 = vector.load %arg2[%c0_1, %c0_2] : memref<512x256xf32, #tpu.memory_space<vmem>>, vector<512x256xf32>
    %cst = arith.constant dense<0.000000e+00> : vector<8x256xf32>
    %2 = tpu.matmul %0, %1, %cst {dimension_numbers = #tpu.dot_dimension_numbers<[1], [0], [0], [1], [0, 0, 1, 1], [], []>} : vector<8x512xf32>, vector<512x256xf32>, vector<8x256xf32> -> vector<8x256xf32>
    %c0_3 = arith.constant 0 : index
    %c0_4 = arith.constant 0 : index
    %3 = vector.load %arg3[%c0_3, %c0_4] : memref<1x256xf32, #tpu.memory_space<vmem>>, vector<1x256xf32>
    %4 = vector.broadcast %3 : vector<1x256xf32> to vector<8x256xf32>
    %5 = arith.addf %2, %4 : vector<8x256xf32>
    %cst_5 = arith.constant 0.000000e+00 : f32
    %6 = vector.broadcast %cst_5 : f32 to vector<8x256xf32>
    %7 = arith.maximumf %5, %6 : vector<8x256xf32>
    %c0_6 = arith.constant 0 : index
    %c0_7 = arith.constant 0 : index
    %8 = vector.load %arg4[%c0_6, %c0_7] : memref<256x128xf32, #tpu.memory_space<vmem>>, vector<256x128xf32>
    %cst_8 = arith.constant dense<0.000000e+00> : vector<8x128xf32>
    %9 = tpu.matmul %7, %8, %cst_8 {dimension_numbers = #tpu.dot_dimension_numbers<[1], [0], [0], [1], [0, 0, 1, 1], [], []>} : vector<8x256xf32>, vector<256x128xf32>, vector<8x128xf32> -> vector<8x128xf32>
    %c0_9 = arith.constant 0 : index
    %c0_10 = arith.constant 0 : index
    %10 = vector.load %arg5[%c0_9, %c0_10] : memref<1x128xf32, #tpu.memory_space<vmem>>, vector<1x128xf32>
    %11 = vector.broadcast %10 : vector<1x128xf32> to vector<8x128xf32>
    %12 = arith.addf %9, %11 : vector<8x128xf32>
    %cst_11 = arith.constant 0.000000e+00 : f32
    %13 = vector.broadcast %cst_11 : f32 to vector<8x128xf32>
    %14 = arith.maximumf %12, %13 : vector<8x128xf32>
    %15 = math.absf %12 : vector<8x128xf32>
    %cst_12 = arith.constant 0.000000e+00 : f32
    %16 = vector.broadcast %cst_12 : f32 to vector<8x128xf32>
    %17 = arith.subf %16, %15 : vector<8x128xf32>
    %18 = math.exp %17 : vector<8x128xf32>
    %19 = math.log1p %18 : vector<8x128xf32>
    %20 = arith.addf %14, %19 : vector<8x128xf32>
    %21 = tpu.iota {dimensions = array<i32: 1>} : vector<8x128xi32>
    %c16_i32 = arith.constant 16 : i32
    %c0_i32 = arith.constant 0 : i32
    %22 = arith.cmpi eq, %c16_i32, %c0_i32 : i32
    %c1_i32 = arith.constant 1 : i32
    %23 = arith.select %22, %c1_i32, %c16_i32 : i32
    %24 = vector.broadcast %23 : i32 to vector<8x128xi32>
    %25 = arith.remsi %21, %24 : vector<8x128xi32>
    %c0_i32_13 = arith.constant 0 : i32
    %26 = vector.broadcast %c0_i32_13 : i32 to vector<8x128xi32>
    %27 = arith.cmpi ne, %25, %26 : vector<8x128xi32>
    %c0_i32_14 = arith.constant 0 : i32
    %28 = vector.broadcast %c0_i32_14 : i32 to vector<8x128xi32>
    %29 = arith.cmpi slt, %25, %28 : vector<8x128xi32>
    %c0_i32_15 = arith.constant 0 : i32
    %30 = arith.cmpi slt, %23, %c0_i32_15 : i32
    %31 = vector.broadcast %30 : i1 to vector<8x128xi1>
    %32 = vector.broadcast %31 : vector<8x128xi1> to vector<8x128xi1>
    %33 = arith.xori %29, %32 : vector<8x128xi1>
    %34 = arith.andi %33, %27 : vector<8x128xi1>
    %35 = vector.broadcast %23 : i32 to vector<8x128xi32>
    %36 = arith.addi %25, %35 : vector<8x128xi32>
    %37 = arith.select %34, %36, %25 : vector<8x128xi1>, vector<8x128xi32>
    %c8_i32 = arith.constant 8 : i32
    %38 = vector.broadcast %c8_i32 : i32 to vector<8x128xi32>
    %39 = arith.cmpi slt, %37, %38 : vector<8x128xi32>
    %40 = arith.select %39, %12, %20 : vector<8x128xi1>, vector<8x128xf32>
    %c0_16 = arith.constant 0 : index
    %c0_17 = arith.constant 0 : index
    %41 = vector.load %arg6[%c0_16, %c0_17] : memref<8x128xf32, #tpu.memory_space<vmem>>, vector<8x128xf32>
    tpu.vector_store %arg6[%c0_16, %c0_17], %40 {strides = array<i32>} : memref<8x128xf32, #tpu.memory_space<vmem>>, vector<8x128xf32>,
    return
  }
  func.func @transform_0(%arg0: i32) -> (i32, i32) {
    %c0_i32 = arith.constant 0 : i32
    %c0_i32_0 = arith.constant 0 : i32
    return %arg0, %c0_i32 : i32, i32
  }
  func.func @transform_1(%arg0: i32) -> (i32, i32) {
    %c0_i32 = arith.constant 0 : i32
    %c0_i32_0 = arith.constant 0 : i32
    %c0_i32_1 = arith.constant 0 : i32
    return %c0_i32, %c0_i32_0 : i32, i32
  }
  func.func @transform_2(%arg0: i32) -> (i32, i32) {
    %c0_i32 = arith.constant 0 : i32
    %c0_i32_0 = arith.constant 0 : i32
    %c0_i32_1 = arith.constant 0 : i32
    return %c0_i32, %c0_i32_0 : i32, i32
  }
  func.func @transform_3(%arg0: i32) -> (i32, i32) {
    %c0_i32 = arith.constant 0 : i32
    %c0_i32_0 = arith.constant 0 : i32
    %c0_i32_1 = arith.constant 0 : i32
    return %c0_i32, %c0_i32_0 : i32, i32
  }
  func.func @transform_4(%arg0: i32) -> (i32, i32) {
    %c0_i32 = arith.constant 0 : i32
    %c0_i32_0 = arith.constant 0 : i32
    %c0_i32_1 = arith.constant 0 : i32
    return %c0_i32, %c0_i32_0 : i32, i32
  }
  func.func @transform_5(%arg0: i32) -> (i32, i32) {
    %c0_i32 = arith.constant 0 : i32
    %c0_i32_0 = arith.constant 0 : i32
    return %arg0, %c0_i32 : i32, i32
  }
}

</mosaic_0001>

<llo_original>
// kernel: tpu_custom_call.1
$region0: #{tpu_custom_call.1}
  #allocation0 [shape = 'u32[]', space=smem, size = 0x4, offset = 0x4, fixed_abs, tag = 'smem constant byte address 0x4 - core index']
  #allocation1 [shape = 'u32[144,128]{1,0:T(1,128)}', space=vmem, size = 0x12000, scoped, tag = 'internal scratch']
  %s0 = inlined_call_operand.hbm [shape: f32[8,512], index: 0, kind: input, shape index: {}]
  %s1 = inlined_call_operand.hbm [shape: f32[512,256], index: 1, kind: input, shape index: {}]
  %s2 = inlined_call_operand.vmem [shape: f32[1,256], index: 2, kind: input, shape index: {}]
  %s3 = inlined_call_operand.hbm [shape: f32[256,128], index: 3, kind: input, shape index: {}]
  %s4 = inlined_call_operand.vmem [shape: f32[1,128], index: 4, kind: input, shape index: {}]
  %s5 = inlined_call_operand.hbm [shape: f32[8,128], index: 5, kind: output, shape index: {}]
  %s6 = sld [smem:[#allocation0]]
  $region42: #{tpu_custom_call.1} parent=0
    _
  %s8 = ssub.s32 1, %s6
  %s9 = scalar_select 0, %s8, %s6
  $region1: #{tpu_custom_call.1} parent=0
    #allocation2 [shape = 'u8[16384]{0}', space=vmem, size = 0x4000, scoped, tag = 'input window, operand 0, single buffered']
    #allocation3 [shape = 's32[1]{0}', space=sflag, size = 0x4, scoped, tag = 'scoped memory for tpu_custom_call.1']
    #allocation4 [shape = 's32[1]{0}', space=sflag, size = 0x4, scoped, tag = 'scoped memory for tpu_custom_call.1']
    #allocation5 [shape = 'u8[524288]{0}', space=vmem, size = 0x80000, scoped, tag = 'input window, operand 1, single buffered']
    #allocation6 [shape = 's32[1]{0}', space=sflag, size = 0x4, scoped, tag = 'scoped memory for tpu_custom_call.1']
    #allocation7 [shape = 'u8[131072]{0}', space=vmem, size = 0x20000, scoped, tag = 'input window, operand 3, single buffered']
    #allocation8 [shape = 'u8[4096]{0}', space=vmem, size = 0x1000, scoped, tag = 'output window, operand 0, single buffered']
    %10 = vsyncpa [#allocation3], 0
    %11 = vsyncpa [#allocation6], 0
    %12 = vsyncpa [#allocation4], 0
    // Predicated region
    $region2: #{tpu_custom_call.1} parent=1 // pred_check
      _
    $region3: #{tpu_custom_call.1} parent=1 // pred_check_branch
      %14 = sbr.rel (0) target = $region5
    $region4: #{tpu_custom_call.1} parent=1 // pred_region
      %s16 = ssub.s32 512, 512
      %17 = vsyncadd [#allocation3], %s16
      %s19 = sshll.u32 [#allocation2], 4
      %s20 = int_to_ptr.vmem [resolvable:$true] %s19
      %22 = dma.hbm_to_vmem [thread:$0]  %s0, 512, %s20, [#allocation3]
    $region5: #{tpu_custom_call.1} parent=1 // pred_fallthru
      _
    // Predicated region
    $region6: #{tpu_custom_call.1} parent=1 // pred_check
      _
    $region7: #{tpu_custom_call.1} parent=1 // pred_check_branch
      %24 = sbr.rel (0) target = $region9
    $region8: #{tpu_custom_call.1} parent=1 // pred_region
      %s26 = ssub.s32 16384, 16384
      %27 = vsyncadd [#allocation6], %s26
      %s28 = sshll.u32 [#allocation5], 4
      %s29 = int_to_ptr.vmem [resolvable:$true] %s28
      %34 = dma.hbm_to_vmem [thread:$0]  %s1, 16384, %s29, [#allocation6], 256, 256, 16
    $region9: #{tpu_custom_call.1} parent=1 // pred_fallthru
      _
    // Predicated region
    $region10: #{tpu_custom_call.1} parent=1 // pred_check
      _
    $region11: #{tpu_custom_call.1} parent=1 // pred_check_branch
      %36 = sbr.rel (0) target = $region13
    $region12: #{tpu_custom_call.1} parent=1 // pred_region
      _
    $region13: #{tpu_custom_call.1} parent=1 // pred_fallthru
      _
    // Predicated region
    $region14: #{tpu_custom_call.1} parent=1 // pred_check
      _
    $region15: #{tpu_custom_call.1} parent=1 // pred_check_branch
      %38 = sbr.rel (0) target = $region17
    $region16: #{tpu_custom_call.1} parent=1 // pred_region
      %s40 = ssub.s32 4096, 4096
      %41 = vsyncadd [#allocation6], %s40
      %s42 = sshll.u32 [#allocation7], 4
      %s43 = int_to_ptr.vmem [resolvable:$true] %s42
      %48 = dma.hbm_to_vmem [thread:$0]  %s3, 4096, %s43, [#allocation6], 128, 128, 8
    $region17: #{tpu_custom_call.1} parent=1 // pred_fallthru
      _
    // Predicated region
    $region18: #{tpu_custom_call.1} parent=1 // pred_check
      _
    $region19: #{tpu_custom_call.1} parent=1 // pred_check_branch
      %50 = sbr.rel (0) target = $region21
    $region20: #{tpu_custom_call.1} parent=1 // pred_region
      _
    $region21: #{tpu_custom_call.1} parent=1 // pred_fallthru
      _
    // Predicated region
    $region22: #{tpu_custom_call.1} parent=1 // pred_check
      _
    $region23: #{tpu_custom_call.1} parent=1 // pred_check_branch
      %52 = sbr.rel (0) target = $region25
    $region24: #{tpu_custom_call.1} parent=1 // pred_region
      %53 = dma.done [#allocation3], 512
    $region25: #{tpu_custom_call.1} parent=1 // pred_fallthru
      _
    // Predicated region
    $region26: #{tpu_custom_call.1} parent=1 // pred_check
      _
    $region27: #{tpu_custom_call.1} parent=1 // pred_check_branch
      %55 = sbr.rel (0) target = $region29
    $region28: #{tpu_custom_call.1} parent=1 // pred_region
      %56 = dma.done [#allocation6], 16384
    $region29: #{tpu_custom_call.1} parent=1 // pred_fallthru
      _
    // Predicated region
    $region30: #{tpu_custom_call.1} parent=1 // pred_check
      _
    $region31: #{tpu_custom_call.1} parent=1 // pred_check_branch
      %58 = sbr.rel (0) target = $region33
    $region32: #{tpu_custom_call.1} parent=1 // pred_region
      %59 = dma.done [#allocation6], 4096
    $region33: #{tpu_custom_call.1} parent=1 // pred_fallthru
      _
    %v60 = vld [vmem:[#allocation2] sm:$0xff]
    %v61 = vld [vmem:[#allocation2 + $0x8] sm:$0xff]
    %v62 = vld [vmem:[#allocation2 + $0x10] sm:$0xff]
    %v63 = vld [vmem:[#allocation2 + $0x18] sm:$0xff]
    %v64 = vld [vmem:[#allocation5] sm:$0xff]
    %v65 = vld [vmem:[#allocation5 + $0x8] sm:$0xff]
    %v66 = vld [vmem:[#allocation5 + $0x10] sm:$0xff]
    %v67 = vld [vmem:[#allocation5 + $0x18] sm:$0xff]
    %v68 = vld [vmem:[#allocation5 + $0x20] sm:$0xff]
    %v69 = vld [vmem:[#allocation5 + $0x28] sm:$0xff]
    %v70 = vld [vmem:[#allocation5 + $0x30] sm:$0xff]
    %v71 = vld [vmem:[#allocation5 + $0x38] sm:$0xff]
    %v72 = vld [vmem:[#allocation5 + $0x40] sm:$0xff]
    %v73 = vld [vmem:[#allocation5 + $0x48] sm:$0xff]
    %v74 = vld [vmem:[#allocation5 + $0x50] sm:$0xff]
    %v75 = vld [vmem:[#allocation5 + $0x58] sm:$0xff]
    %v76 = vld [vmem:[#allocation5 + $0x60] sm:$0xff]
    %v77 = vld [vmem:[#allocation5 + $0x68] sm:$0xff]
    %v78 = vld [vmem:[#allocation5 + $0x70] sm:$0xff]
    %v79 = vld [vmem:[#allocation5 + $0x78] sm:$0xff]
    %v80 = vld [vmem:[#allocation5 + $0x80] sm:$0xff]
    %v81 = vld [vmem:[#allocation5 + $0x88] sm:$0xff]
    %v82 = vld [vmem:[#allocation5 + $0x90] sm:$0xff]
    %v83 = vld [vmem:[#allocation5 + $0x98] sm:$0xff]
    %v84 = vld [vmem:[#allocation5 + $0xa0] sm:$0xff]
    %v85 = vld [vmem:[#allocation5 + $0xa8] sm:$0xff]
    %v86 = vld [vmem:[#allocation5 + $0xb0] sm:$0xff]
    %v87 = vld [vmem:[#allocation5 + $0xb8] sm:$0xff]
    %v88 = vld [vmem:[#allocation5 + $0xc0] sm:$0xff]
    %v89 = vld [vmem:[#allocation5 + $0xc8] sm:$0xff]
    %v90 = vld [vmem:[#allocation5 + $0xd0] sm:$0xff]
    %v91 = vld [vmem:[#allocation5 + $0xd8] sm:$0xff]
    %v92 = vld [vmem:[#allocation5 + $0xe0] sm:$0xff]
    %v93 = vld [vmem:[#allocation5 + $0xe8] sm:$0xff]
    %v94 = vld [vmem:[#allocation5 + $0xf0] sm:$0xff]
    %v95 = vld [vmem:[#allocation5 + $0xf8] sm:$0xff]
    %v96 = vld [vmem:[#allocation5 + $0x100] sm:$0xff]
    %v97 = vld [vmem:[#allocation5 + $0x108] sm:$0xff]
    %v98 = vld [vmem:[#allocation5 + $0x110] sm:$0xff]
    %v99 = vld [vmem:[#allocation5 + $0x118] sm:$0xff]
    %v100 = vld [vmem:[#allocation5 + $0x120] sm:$0xff]
    %v101 = vld [vmem:[#allocation5 + $0x128] sm:$0xff]
    %v102 = vld [vmem:[#allocation5 + $0x130] sm:$0xff]
    %v103 = vld [vmem:[#allocation5 + $0x138] sm:$0xff]
    %v104 = vld [vmem:[#allocation5 + $0x140] sm:$0xff]
    %v105 = vld [vmem:[#allocation5 + $0x148] sm:$0xff]
    %v106 = vld [vmem:[#allocation5 + $0x150] sm:$0xff]
    %v107 = vld [vmem:[#allocation5 + $0x158] sm:$0xff]
    %v108 = vld [vmem:[#allocation5 + $0x160] sm:$0xff]
    %v109 = vld [vmem:[#allocation5 + $0x168] sm:$0xff]
    %v110 = vld [vmem:[#allocation5 + $0x170] sm:$0xff]
    %v111 = vld [vmem:[#allocation5 + $0x178] sm:$0xff]
    %v112 = vld [vmem:[#allocation5 + $0x180] sm:$0xff]
    %v113 = vld [vmem:[#allocation5 + $0x188] sm:$0xff]
    %v114 = vld [vmem:[#allocation5 + $0x190] sm:$0xff]
    %v115 = vld [vmem:[#allocation5 + $0x198] sm:$0xff]
    %v116 = vld [vmem:[#allocation5 + $0x1a0] sm:$0xff]
    %v117 = vld [vmem:[#allocation5 + $0x1a8] sm:$0xff]
    %v118 = vld [vmem:[#allocation5 + $0x1b0] sm:$0xff]
    %v119 = vld [vmem:[#allocation5 + $0x1b8] sm:$0xff]
    %v120 = vld [vmem:[#allocation5 + $0x1c0] sm:$0xff]
    %v121 = vld [vmem:[#allocation5 + $0x1c8] sm:$0xff]
    %v122 = vld [vmem:[#allocation5 + $0x1d0] sm:$0xff]
    %v123 = vld [vmem:[#allocation5 + $0x1d8] sm:$0xff]
    %v124 = vld [vmem:[#allocation5 + $0x1e0] sm:$0xff]
    %v125 = vld [vmem:[#allocation5 + $0x1e8] sm:$0xff]
    %v126 = vld [vmem:[#allocation5 + $0x1f0] sm:$0xff]
    %v127 = vld [vmem:[#allocation5 + $0x1f8] sm:$0xff]
    %v128 = vld [vmem:[#allocation5 + $0x200] sm:$0xff]
    %v129 = vld [vmem:[#allocation5 + $0x208] sm:$0xff]
    %v130 = vld [vmem:[#allocation5 + $0x210] sm:$0xff]
    %v131 = vld [vmem:[#allocation5 + $0x218] sm:$0xff]
    %v132 = vld [vmem:[#allocation5 + $0x220] sm:$0xff]
    %v133 = vld [vmem:[#allocation5 + $0x228] sm:$0xff]
    %v134 = vld [vmem:[#allocation5 + $0x230] sm:$0xff]
    %v135 = vld [vmem:[#allocation5 + $0x238] sm:$0xff]
    %v136 = vld [vmem:[#allocation5 + $0x240] sm:$0xff]
    %v137 = vld [vmem:[#allocation5 + $0x248] sm:$0xff]
    %v138 = vld [vmem:[#allocation5 + $0x250] sm:$0xff]
    %v139 = vld [vmem:[#allocation5 + $0x258] sm:$0xff]
    %v140 = vld [vmem:[#allocation5 + $0x260] sm:$0xff]
    %v141 = vld [vmem:[#allocation5 + $0x268] sm:$0xff]
    %v142 = vld [vmem:[#allocation5 + $0x270] sm:$0xff]
    %v143 = vld [vmem:[#allocation5 + $0x278] sm:$0xff]
    %v144 = vld [vmem:[#allocation5 + $0x280] sm:$0xff]
    %v145 = vld [vmem:[#allocation5 + $0x288] sm:$0xff]
    %v146 = vld [vmem:[#allocation5 + $0x290] sm:$0xff]
    %v147 = vld [vmem:[#allocation5 + $0x298] sm:$0xff]
    %v148 = vld [vmem:[#allocation5 + $0x2a0] sm:$0xff]
    %v149 = vld [vmem:[#allocation5 + $0x2a8] sm:$0xff]
    %v150 = vld [vmem:[#allocation5 + $0x2b0] sm:$0xff]
    %v151 = vld [vmem:[#allocation5 + $0x2b8] sm:$0xff]
    %v152 = vld [vmem:[#allocation5 + $0x2c0] sm:$0xff]
    %v153 = vld [vmem:[#allocation5 + $0x2c8] sm:$0xff]
    %v154 = vld [vmem:[#allocation5 + $0x2d0] sm:$0xff]
    %v155 = vld [vmem:[#allocation5 + $0x2d8] sm:$0xff]
    %v156 = vld [vmem:[#allocation5 + $0x2e0] sm:$0xff]
    %v157 = vld [vmem:[#allocation5 + $0x2e8] sm:$0xff]
    %v158 = vld [vmem:[#allocation5 + $0x2f0] sm:$0xff]
    %v159 = vld [vmem:[#allocation5 + $0x2f8] sm:$0xff]
    %v160 = vld [vmem:[#allocation5 + $0x300] sm:$0xff]
    %v161 = vld [vmem:[#allocation5 + $0x308] sm:$0xff]
    %v162 = vld [vmem:[#allocation5 + $0x310] sm:$0xff]
    %v163 = vld [vmem:[#allocation5 + $0x318] sm:$0xff]
    %v164 = vld [vmem:[#allocation5 + $0x320] sm:$0xff]
    %v165 = vld [vmem:[#allocation5 + $0x328] sm:$0xff]
    %v166 = vld [vmem:[#allocation5 + $0x330] sm:$0xff]
    %v167 = vld [vmem:[#allocation5 + $0x338] sm:$0xff]
    %v168 = vld [vmem:[#allocation5 + $0x340] sm:$0xff]
    %v169 = vld [vmem:[#allocation5 + $0x348] sm:$0xff]
    %v170 = vld [vmem:[#allocation5 + $0x350] sm:$0xff]
    %v171 = vld [vmem:[#allocation5 + $0x358] sm:$0xff]
    %v172 = vld [vmem:[#allocation5 + $0x360] sm:$0xff]
    %v173 = vld [vmem:[#allocation5 + $0x368] sm:$0xff]
    %v174 = vld [vmem:[#allocation5 + $0x370] sm:$0xff]
    %v175 = vld [vmem:[#allocation5 + $0x378] sm:$0xff]
    %v176 = vld [vmem:[#allocation5 + $0x380] sm:$0xff]
    %v177 = vld [vmem:[#allocation5 + $0x388] sm:$0xff]
    %v178 = vld [vmem:[#allocation5 + $0x390] sm:$0xff]
    %v179 = vld [vmem:[#allocation5 + $0x398] sm:$0xff]
    %v180 = vld [vmem:[#allocation5 + $0x3a0] sm:$0xff]
    %v181 = vld [vmem:[#allocation5 + $0x3a8] sm:$0xff]
    %v182 = vld [vmem:[#allocation5 + $0x3b0] sm:$0xff]
    %v183 = vld [vmem:[#allocation5 + $0x3b8] sm:$0xff]
    %v184 = vld [vmem:[#allocation5 + $0x3c0] sm:$0xff]
    %v185 = vld [vmem:[#allocation5 + $0x3c8] sm:$0xff]
    %v186 = vld [vmem:[#allocation5 + $0x3d0] sm:$0xff]
    %v187 = vld [vmem:[#allocation5 + $0x3d8] sm:$0xff]
    %v188 = vld [vmem:[#allocation5 + $0x3e0] sm:$0xff]
    %v189 = vld [vmem:[#allocation5 + $0x3e8] sm:$0xff]
    %v190 = vld [vmem:[#allocation5 + $0x3f0] sm:$0xff]
    %v191 = vld [vmem:[#allocation5 + $0x3f8] sm:$0xff]
    %v192 = vld [vmem:[%s2] sm:$0x3]
    %v194 = vlaneseq
    %v195 = vshrl.u32 %v194, 7
    %v196 = vsub.s32 0, %v195
    %v197 = vrot.slane %v192, %v196
    %v198 = vlaneseq
    %v199 = vshrl.u32 %v198, 7
    %v200 = vsub.s32 1, %v199
    %v201 = vrot.slane %v192, %v200
    %204 = vmatprep.subr.mxu0 %v65
    %205 = vmatpush1.msra.mxu0 %v64
    %206 = vmatprep.subr.mxu0 %v67
    %207 = vmatpush1.msra.mxu0 %v66
    %208 = vmatprep.subr.mxu0 %v69
    %209 = vmatpush1.msra.mxu0 %v68
    %210 = vmatprep.subr.mxu0 %v71
    %211 = vmatpush1.msra.mxu0 %v70
    %212 = vmatprep.subr.mxu0 %v73
    %213 = vmatpush1.msra.mxu0 %v72
    %214 = vmatprep.subr.mxu0 %v75
    %215 = vmatpush1.msra.mxu0 %v74
    %216 = vmatprep.subr.mxu0 %v77
    %217 = vmatpush1.msra.mxu0 %v76
    %218 = vmatprep.subr.mxu0 %v79
    %219 = vmatpush1.msra.mxu0 %v78
    %220 = vmatprep.subr.mxu0 %v81
    %221 = vmatpush1.msra.mxu0 %v80
    %222 = vmatprep.subr.mxu0 %v83
    %223 = vmatpush1.msra.mxu0 %v82
    %224 = vmatprep.subr.mxu0 %v85
    %225 = vmatpush1.msra.mxu0 %v84
    %226 = vmatprep.subr.mxu0 %v87
    %227 = vmatpush1.msra.mxu0 %v86
    %228 = vmatprep.subr.mxu0 %v89
    %229 = vmatpush1.msra.mxu0 %v88
    %230 = vmatprep.subr.mxu0 %v91
    %231 = vmatpush1.msra.mxu0 %v90
    %232 = vmatprep.subr.mxu0 %v93
    %233 = vmatpush1.msra.mxu0 %v92
    %234 = vmatprep.subr.mxu0 %v95
    %235 = vmatpush1.msra.mxu0 %v94
    %236 = vmatprep.subr.mxu0 %v97
    %237 = vmatpush1.msra.mxu0 %v96
    %238 = vmatprep.subr.mxu0 %v99
    %239 = vmatpush1.msra.mxu0 %v98
    %240 = vmatprep.subr.mxu0 %v101
    %241 = vmatpush1.msra.mxu0 %v100
    %242 = vmatprep.subr.mxu0 %v103
    %243 = vmatpush1.msra.mxu0 %v102
    %244 = vmatprep.subr.mxu0 %v105
    %245 = vmatpush1.msra.mxu0 %v104
    %246 = vmatprep.subr.mxu0 %v107
    %247 = vmatpush1.msra.mxu0 %v106
    %248 = vmatprep.subr.mxu0 %v109
    %249 = vmatpush1.msra.mxu0 %v108
    %250 = vmatprep.subr.mxu0 %v111
    %251 = vmatpush1.msra.mxu0 %v110
    %252 = vmatprep.subr.mxu0 %v113
    %253 = vmatpush1.msra.mxu0 %v112
    %254 = vmatprep.subr.mxu0 %v115
    %255 = vmatpush1.msra.mxu0 %v114
    %256 = vmatprep.subr.mxu0 %v117
    %257 = vmatpush1.msra.mxu0 %v116
    %258 = vmatprep.subr.mxu0 %v119
    %259 = vmatpush1.msra.mxu0 %v118
    %260 = vmatprep.subr.mxu0 %v121
    %261 = vmatpush1.msra.mxu0 %v120
    %262 = vmatprep.subr.mxu0 %v123
    %263 = vmatpush1.msra.mxu0 %v122
    %264 = vmatprep.subr.mxu0 %v125
    %265 = vmatpush1.msra.mxu0 %v124
    %266 = vmatprep.subr.mxu0 %v127
    %267 = vmatpush1.msra.mxu0 %v126
    %268 = vmatprep.mubr.f32.mxu0 %v61
    %269 = vmatmul.mubr.f32.gmra.mrb[0].mxu0 %v60
    %v270 = vpop.f32.mrb[0].mxu0
    %v271 = vadd.f32 %v197, %v270
    %v272 = vpop.f32.mrb[0].mxu0
    %v273 = vadd.f32 %v201, %v272
    %274 = vdwg.mxu0
    %275 = vmatprep.subr.mxu0 %v129
    %276 = vmatpush1.msra.mxu0 %v128
    %277 = vmatprep.subr.mxu0 %v131
    %278 = vmatpush1.msra.mxu0 %v130
    %279 = vmatprep.subr.mxu0 %v133
    %280 = vmatpush1.msra.mxu0 %v132
    %281 = vmatprep.subr.mxu0 %v135
    %282 = vmatpush1.msra.mxu0 %v134
    %283 = vmatprep.subr.mxu0 %v137
    %284 = vmatpush1.msra.mxu0 %v136
    %285 = vmatprep.subr.mxu0 %v139
    %286 = vmatpush1.msra.mxu0 %v138
    %287 = vmatprep.subr.mxu0 %v141
    %288 = vmatpush1.msra.mxu0 %v140
    %289 = vmatprep.subr.mxu0 %v143
    %290 = vmatpush1.msra.mxu0 %v142
    %291 = vmatprep.subr.mxu0 %v145
    %292 = vmatpush1.msra.mxu0 %v144
    %293 = vmatprep.subr.mxu0 %v147
    %294 = vmatpush1.msra.mxu0 %v146
    %295 = vmatprep.subr.mxu0 %v149
    %296 = vmatpush1.msra.mxu0 %v148
    %297 = vmatprep.subr.mxu0 %v151
    %298 = vmatpush1.msra.mxu0 %v150
    %299 = vmatprep.subr.mxu0 %v153
    %300 = vmatpush1.msra.mxu0 %v152
    %301 = vmatprep.subr.mxu0 %v155
    %302 = vmatpush1.msra.mxu0 %v154
    %303 = vmatprep.subr.mxu0 %v157
    %304 = vmatpush1.msra.mxu0 %v156
    %305 = vmatprep.subr.mxu0 %v159
    %306 = vmatpush1.msra.mxu0 %v158
    %307 = vmatprep.subr.mxu0 %v161
    %308 = vmatpush1.msra.mxu0 %v160
    %309 = vmatprep.subr.mxu0 %v163
    %310 = vmatpush1.msra.mxu0 %v162
    %311 = vmatprep.subr.mxu0 %v165
    %312 = vmatpush1.msra.mxu0 %v164
    %313 = vmatprep.subr.mxu0 %v167
    %314 = vmatpush1.msra.mxu0 %v166
    %315 = vmatprep.subr.mxu0 %v169
    %316 = vmatpush1.msra.mxu0 %v168
    %317 = vmatprep.subr.mxu0 %v171
    %318 = vmatpush1.msra.mxu0 %v170
    %319 = vmatprep.subr.mxu0 %v173
    %320 = vmatpush1.msra.mxu0 %v172
    %321 = vmatprep.subr.mxu0 %v175
    %322 = vmatpush1.msra.mxu0 %v174
    %323 = vmatprep.subr.mxu0 %v177
    %324 = vmatpush1.msra.mxu0 %v176
    %325 = vmatprep.subr.mxu0 %v179
    %326 = vmatpush1.msra.mxu0 %v178
    %327 = vmatprep.subr.mxu0 %v181
    %328 = vmatpush1.msra.mxu0 %v180
    %329 = vmatprep.subr.mxu0 %v183
    %330 = vmatpush1.msra.mxu0 %v182
    %331 = vmatprep.subr.mxu0 %v185
    %332 = vmatpush1.msra.mxu0 %v184
    %333 = vmatprep.subr.mxu0 %v187
    %334 = vmatpush1.msra.mxu0 %v186
    %335 = vmatprep.subr.mxu0 %v189
    %336 = vmatpush1.msra.mxu0 %v188
    %337 = vmatprep.subr.mxu0 %v191
    %338 = vmatpush1.msra.mxu0 %v190
    %339 = vmatprep.mubr.f32.mxu0 %v63
    %340 = vmatmul.mubr.f32.gmra.mrb[0].mxu0 %v62
    %v341 = vpop.f32.mrb[0].mxu0
    %v342 = vadd.f32 %v271, %v341
    %v343 = vpop.f32.mrb[0].mxu0
    %v344 = vadd.f32 %v273, %v343
    %345 = vdwg.mxu0
    %v346 = vmax.f32 %v342, 0.0
    %v347 = vmax.f32 %v344, 0.0
    %v348 = vld [vmem:[#allocation7] sm:$0xff]
    %v349 = vld [vmem:[#allocation7 + $0x8] sm:$0xff]
    %v350 = vld [vmem:[#allocation7 + $0x10] sm:$0xff]
    %v351 = vld [vmem:[#allocation7 + $0x18] sm:$0xff]
    %v352 = vld [vmem:[#allocation7 + $0x20] sm:$0xff]
    %v353 = vld [vmem:[#allocation7 + $0x28] sm:$0xff]
    %v354 = vld [vmem:[#allocation7 + $0x30] sm:$0xff]
    %v355 = vld [vmem:[#allocation7 + $0x38] sm:$0xff]
    %v356 = vld [vmem:[#allocation7 + $0x40] sm:$0xff]
    %v357 = vld [vmem:[#allocation7 + $0x48] sm:$0xff]
    %v358 = vld [vmem:[#allocation7 + $0x50] sm:$0xff]
    %v359 = vld [vmem:[#allocation7 + $0x58] sm:$0xff]
    %v360 = vld [vmem:[#allocation7 + $0x60] sm:$0xff]
    %v361 = vld [vmem:[#allocation7 + $0x68] sm:$0xff]
    %v362 = vld [vmem:[#allocation7 + $0x70] sm:$0xff]
    %v363 = vld [vmem:[#allocation7 + $0x78] sm:$0xff]
    %v364 = vld [vmem:[#allocation7 + $0x80] sm:$0xff]
    %v365 = vld [vmem:[#allocation7 + $0x88] sm:$0xff]
    %v366 = vld [vmem:[#allocation7 + $0x90] sm:$0xff]
    %v367 = vld [vmem:[#allocation7 + $0x98] sm:$0xff]
    %v368 = vld [vmem:[#allocation7 + $0xa0] sm:$0xff]
    %v369 = vld [vmem:[#allocation7 + $0xa8] sm:$0xff]
    %v370 = vld [vmem:[#allocation7 + $0xb0] sm:$0xff]
    %v371 = vld [vmem:[#allocation7 + $0xb8] sm:$0xff]
    %v372 = vld [vmem:[#allocation7 + $0xc0] sm:$0xff]
    %v373 = vld [vmem:[#allocation7 + $0xc8] sm:$0xff]
    %v374 = vld [vmem:[#allocation7 + $0xd0] sm:$0xff]
    %v375 = vld [vmem:[#allocation7 + $0xd8] sm:$0xff]
    %v376 = vld [vmem:[#allocation7 + $0xe0] sm:$0xff]
    %v377 = vld [vmem:[#allocation7 + $0xe8] sm:$0xff]
    %v378 = vld [vmem:[#allocation7 + $0xf0] sm:$0xff]
    %v379 = vld [vmem:[#allocation7 + $0xf8] sm:$0xff]
    %v380 = vld [vmem:[%s4] sm:$0x1]
    %v382 = vlaneseq
    %v383 = vshrl.u32 %v382, 7
    %v384 = vsub.s32 0, %v383
    %v385 = vrot.slane %v380, %v384
    %387 = vmatprep.subr.mxu0 0.0
    %388 = vmatpush1.msra.mxu0 %v348
    %389 = vmatprep.subr.mxu0 0.0
    %390 = vmatpush1.msra.mxu0 %v349
    %391 = vmatprep.subr.mxu0 0.0
    %392 = vmatpush1.msra.mxu0 %v350
    %393 = vmatprep.subr.mxu0 0.0
    %394 = vmatpush1.msra.mxu0 %v351
    %395 = vmatprep.subr.mxu0 0.0
    %396 = vmatpush1.msra.mxu0 %v352
    %397 = vmatprep.subr.mxu0 0.0
    %398 = vmatpush1.msra.mxu0 %v353
    %399 = vmatprep.subr.mxu0 0.0
    %400 = vmatpush1.msra.mxu0 %v354
    %401 = vmatprep.subr.mxu0 0.0
    %402 = vmatpush1.msra.mxu0 %v355
    %403 = vmatprep.subr.mxu0 0.0
    %404 = vmatpush1.msra.mxu0 %v356
    %405 = vmatprep.subr.mxu0 0.0
    %406 = vmatpush1.msra.mxu0 %v357
    %407 = vmatprep.subr.mxu0 0.0
    %408 = vmatpush1.msra.mxu0 %v358
    %409 = vmatprep.subr.mxu0 0.0
    %410 = vmatpush1.msra.mxu0 %v359
    %411 = vmatprep.subr.mxu0 0.0
    %412 = vmatpush1.msra.mxu0 %v360
    %413 = vmatprep.subr.mxu0 0.0
    %414 = vmatpush1.msra.mxu0 %v361
    %415 = vmatprep.subr.mxu0 0.0
    %416 = vmatpush1.msra.mxu0 %v362
    %417 = vmatprep.subr.mxu0 0.0
    %418 = vmatpush1.msra.mxu0 %v363
    %419 = vmatprep.subr.mxu0 0.0
    %420 = vmatpush1.msra.mxu0 %v364
    %421 = vmatprep.subr.mxu0 0.0
    %422 = vmatpush1.msra.mxu0 %v365
    %423 = vmatprep.subr.mxu0 0.0
    %424 = vmatpush1.msra.mxu0 %v366
    %425 = vmatprep.subr.mxu0 0.0
    %426 = vmatpush1.msra.mxu0 %v367
    %427 = vmatprep.subr.mxu0 0.0
    %428 = vmatpush1.msra.mxu0 %v368
    %429 = vmatprep.subr.mxu0 0.0
    %430 = vmatpush1.msra.mxu0 %v369
    %431 = vmatprep.subr.mxu0 0.0
    %432 = vmatpush1.msra.mxu0 %v370
    %433 = vmatprep.subr.mxu0 0.0
    %434 = vmatpush1.msra.mxu0 %v371
    %435 = vmatprep.subr.mxu0 0.0
    %436 = vmatpush1.msra.mxu0 %v372
    %437 = vmatprep.subr.mxu0 0.0
    %438 = vmatpush1.msra.mxu0 %v373
    %439 = vmatprep.subr.mxu0 0.0
    %440 = vmatpush1.msra.mxu0 %v374
    %441 = vmatprep.subr.mxu0 0.0
    %442 = vmatpush1.msra.mxu0 %v375
    %443 = vmatprep.subr.mxu0 0.0
    %444 = vmatpush1.msra.mxu0 %v376
    %445 = vmatprep.subr.mxu0 0.0
    %446 = vmatpush1.msra.mxu0 %v377
    %447 = vmatprep.subr.mxu0 0.0
    %448 = vmatpush1.msra.mxu0 %v378
    %449 = vmatprep.subr.mxu0 0.0
    %450 = vmatpush1.msra.mxu0 %v379
    %451 = vmatprep.mubr.f32.mxu0 %v347
    %452 = vmatmul.mubr.f32.gmra.mrb[0].mxu0 %v346
    %v453 = vpop.f32.mrb[0].mxu0
    %v454 = vadd.f32 %v385, %v453
    %v455 = vpop.f32.mrb[0].mxu0
    %456 = vdwg.mxu0
    %v457 = vmax.f32 %v454, 0.0
    %v458 = vand.u32 2147483647, %v454
    %v459 = vsub.f32 0.0, %v458
    %v460 = vmul.f32 %v459, 1.442695
    %v461 = vpow.pop %v460
    %v462 = vadd.f32 %v461, 1.0
    %v463 = vlog2.pop %v462
    %v464 = vmul.f32 %v463, 0.6931472
    %v465 = vmul.f32 -0.5, %v461
    %v466 = vadd.f32 %v465, 1.0
    %v467 = vmul.f32 %v466, %v461
    %v468 = vand.u32 2147483647, %v461
    %vm469 = vcmp.lt.f32.partialorder %v468, 0.0004427343
    %v470 = vsel %vm469, %v467, %v464
    %v471 = vadd.f32 %v457, %v470
    %v472 = vlaneseq
    %v473 = vand.u32 %v472, 127
    %vm474 = vcmp.lt.s32.totalorder %v473, 0
    %v475 = vsub.s32 0, %v473
    %v476 = vsel %vm474, %v475, %v473
    %v477 = vshrl.u32 %v476, 4
    %v478 = vand.u32 %v476, 15
    %v479 = vsub.s32 0, %v478
    %v480 = vsel %vm474, %v479, %v478
    %vm481 = vcmp.ne.s32.totalorder %v480, 0
    %vm482 = vcmp.lt.s32.totalorder %v480, 0
    %vm483 = vmand %vm482, %vm481
    %v484 = vadd.s32 %v480, 16
    %v485 = vsel %vm483, %v484, %v480
    %vm486 = vcmp.lt.s32.totalorder %v485, 8
    %v487 = vsel %vm486, %v454, %v471
    %488 = vst [vmem:[#allocation8] sm:$0xff] %v487
    // Predicated region
    $region34: #{tpu_custom_call.1} parent=1 // pred_check
      _
    $region35: #{tpu_custom_call.1} parent=1 // pred_check_branch
      %490 = sbr.rel (0) target = $region37
    $region36: #{tpu_custom_call.1} parent=1 // pred_region
      %s492 = ssub.s32 128, 128
      %493 = vsyncadd [#allocation4], %s492
      %s495 = sshll.u32 [#allocation8], 4
      %s496 = int_to_ptr.vmem [resolvable:$true] %s495
      %498 = dma.vmem_to_hbm [thread:$0]  %s496, 128, %s5, [#allocation4]
    $region37: #{tpu_custom_call.1} parent=1 // pred_fallthru
      _
    // Predicated region
    $region38: #{tpu_custom_call.1} parent=1 // pred_check
      _
    $region39: #{tpu_custom_call.1} parent=1 // pred_check_branch
      %500 = sbr.rel (0) target = $region41
    $region40: #{tpu_custom_call.1} parent=1 // pred_region
      %501 = dma.done [#allocation4], 128
    $region41: #{tpu_custom_call.1} parent=1 // pred_fallthru
      _
    %502 = vsyncpa [#allocation3], 1
    %503 = vsyncpa [#allocation6], 1
    %504 = vsyncpa [#allocation4], 1

</llo_original>
